<compile_context>
chip_gen: v7x
topology: tpu7x:2x2x1
jax: 0.10.0
libtpu: 0.0.40
codegen_flags: <defaults>
</compile_context>

<pallas_src>
import math
import functools

import jax
import jax.numpy as jnp
from jax.experimental import pallas as pl
from jax.experimental.pallas import tpu as pltpu


# ----------------------------------------------------------------------------
# Parameter ("buffer") setup — plain JAX glue, deterministic.
# ----------------------------------------------------------------------------
def make_positional_encoding_table(d_model: int, max_len: int = 5000) -> jnp.ndarray:
    """Replicates the torch buffer: pe shape (max_len, 1, d_model)."""
    position = jnp.arange(0, max_len, dtype=jnp.float32)[:, None]             # (L, 1)
    div_term = jnp.exp(
        jnp.arange(0, d_model, 2, dtype=jnp.float32) * (-math.log(10000.0) / d_model)
    )                                                                          # (D/2,)
    angles = position * div_term                                               # (L, D/2)
    pe = jnp.zeros((max_len, d_model), dtype=jnp.float32)
    pe = pe.at[:, 0::2].set(jnp.sin(angles))
    pe = pe.at[:, 1::2].set(jnp.cos(angles))
    return pe[:, None, :]                                                      # (L, 1, D)


# ----------------------------------------------------------------------------
# Kernels
# ----------------------------------------------------------------------------
def _pe_add_kernel(x_ref, pe_ref, o_ref):
    # Works for both layouts:
    #   3-D path: x (ts, B, D) + pe (ts, 1, D)  (sublane broadcast over B)
    #   2-D path: x (ts, K)    + pe (ts, K)
    o_ref[...] = x_ref[...] + pe_ref[...]


def _pe_add_dropout_kernel(seed_ref, x_ref, pe_ref, o_ref, *, p: float):
    """Positional add followed by inverted dropout.

    Dropout bits come from a counter-based hash of the *global* element index
    keyed by the seed, so results are deterministic, independent of grid
    iteration order (safe with "parallel" semantics), and need no extra HBM
    traffic for a random-bits stream.
    """
    y = x_ref[...] + pe_ref[...]

    shape = o_ref.shape                     # block shape (tail blocks are masked)
    block_rows = shape[0]
    row_stride = 1
    for d in shape[1:]:
        row_stride *= d

    # Global linear element index (uint32; wraps for astronomically large
    # tensors which is fine for hashing).  Blocks always span the full
    # trailing dims, so index = global_row * row_stride + within_row.
    row0 = pl.program_id(0) * block_rows
    idx = (jax.lax.broadcasted_iota(jnp.int32, shape, 0) + row0).astype(jnp.uint32)
    idx = idx * jnp.uint32(row_stride & 0xFFFFFFFF)
    stride = 1
    for d in range(len(shape) - 1, 0, -1):
        idx = idx + (
            jax.lax.broadcasted_iota(jnp.int32, shape, d).astype(jnp.uint32)
            * jnp.uint32(stride)
        )
        stride *= shape[d]

    # murmur3 fmix32 finalizer, keyed by the runtime seed (SMEM scalar).
    h = idx ^ (seed_ref[0].astype(jnp.uint32) * jnp.uint32(0x9E3779B1))
    h = h ^ (h >> jnp.uint32(16))
    h = h * jnp.uint32(0x85EBCA6B)
    h = h ^ (h >> jnp.uint32(13))
    h = h * jnp.uint32(0xC2B2AE35)
    h = h ^ (h >> jnp.uint32(16))

    # Integer-threshold compare: keep with probability (1 - p).
    thr = jnp.uint32(min(int(round(p * 4294967296.0)), 4294967295))
    keep = h >= thr
    scale = jnp.asarray(1.0 / (1.0 - p), dtype=y.dtype)
    o_ref[...] = jnp.where(keep, y * scale, jnp.zeros_like(y))


# ----------------------------------------------------------------------------
# Tile sizing — VMEM-budget driven (conservative across v5e / v6e / v7x).
# ----------------------------------------------------------------------------
# v7x has only 64 MiB physical VMEM per TensorCore, so keep the working set
# under ~48-56 MiB; this is also well below v5e/v6e's 128 MiB physical.
_VMEM_TILE_BUDGET_BYTES = 40 * 1024 * 1024   # budget for (double-buffered) blocks
_VMEM_LIMIT_BYTES = 56 * 1024 * 1024         # explicit scoped-VMEM limit


def _pick_seq_tile(seq_len: int, bytes_per_row: int) -> int:
    """Largest multiple-of-8 sequence tile whose blocks fit the VMEM budget."""
    cand = (_VMEM_TILE_BUDGET_BYTES // max(1, bytes_per_row)) // 8 * 8
    cand = max(8, cand)
    return seq_len if seq_len <= cand else cand


# ----------------------------------------------------------------------------
# Wrapper
# ----------------------------------------------------------------------------
def positional_encoding_forward(
    x: jnp.ndarray,
    pe: jnp.ndarray,
    *,
    dropout_p: float = 0.1,
    training: bool = False,
    seed: int = 0,
    donate_x: bool = False,
) -> jnp.ndarray:
    """x: (S, B, D);  pe: (max_len, 1, D).  Returns (S, B, D)."""
    S, B, D = x.shape
    itemsize = jnp.dtype(x.dtype).itemsize
    use_dropout = training and dropout_p > 0.0
    if training and dropout_p >= 1.0:
        return jnp.zeros_like(x)

    # Lane/sublane-dense 3-D path only when the last two dims already tile
    # cleanly into (8, 128) vregs; otherwise flatten to (S, B*D) and broadcast
    # pe on the host (extra pe read is a net win vs masked partial stores).
    lane_dense_3d = (D % 128 == 0) and (B % 8 == 0)

    if lane_dense_3d:
        x_op = x
        pe_op = pe[:S].astype(x.dtype)                        # (S, 1, D)
        # x + out blocks double-buffered, pe block double-buffered.
        bytes_per_row = (2 * 2 * B * D + 2 * D) * itemsize
        ts = _pick_seq_tile(S, bytes_per_row)
        blk_x = (ts, B, D)
        blk_pe = (ts, 1, D)
        out_shape = jax.ShapeDtypeStruct((S, B, D), x.dtype)
        reshape_out = False
    else:
        K = B * D
        x_op = x.reshape(S, K)
        pe_op = jnp.broadcast_to(pe[:S].astype(x.dtype), (S, B, D)).reshape(S, K)
        bytes_per_row = 3 * 2 * K * itemsize                  # x, pe, out; 2x buffered
        ts = _pick_seq_tile(S, bytes_per_row)
        blk_x = (ts, K)
        blk_pe = (ts, K)
        out_shape = jax.ShapeDtypeStruct((S, K), x.dtype)
        reshape_out = True

    grid = (pl.cdiv(S, ts),)                                  # tail block is masked

    compiler_params = pltpu.CompilerParams(
        # Grid iterations are independent (dropout hash uses global indices),
        # so "parallel" lets v7x shard sequence tiles across both TCs.
        dimension_semantics=("parallel",),
        vmem_limit_bytes=_VMEM_LIMIT_BYTES,
    )

    ndim = len(blk_x)

    if not use_dropout:
        idx = lambda i: (i,) + (0,) * (ndim - 1)
        out = pl.pallas_call(
            _pe_add_kernel,
            out_shape=out_shape,
            grid_spec=pltpu.PrefetchScalarGridSpec(
                num_scalar_prefetch=0,
                grid=grid,
                in_specs=[pl.BlockSpec(blk_x, idx), pl.BlockSpec(blk_pe, idx)],
                out_specs=pl.BlockSpec(blk_x, idx),
            ),
            compiler_params=compiler_params,
            input_output_aliases=({0: 0} if donate_x else {}),
        )(x_op, pe_op)
    else:
        seed_arr = jnp.asarray([seed], dtype=jnp.int32)
        idx = lambda i, seed_ref: (i,) + (0,) * (ndim - 1)
        kernel = functools.partial(_pe_add_dropout_kernel, p=float(dropout_p))
        out = pl.pallas_call(
            kernel,
            out_shape=out_shape,
            grid_spec=pltpu.PrefetchScalarGridSpec(
                num_scalar_prefetch=1,
                grid=grid,
                in_specs=[pl.BlockSpec(blk_x, idx), pl.BlockSpec(blk_pe, idx)],
                out_specs=pl.BlockSpec(blk_x, idx),
            ),
            compiler_params=compiler_params,
        )(seed_arr, x_op, pe_op)

    if reshape_out:
        out = out.reshape(S, B, D)
    return out


# ----------------------------------------------------------------------------
# Demo / self-test
# ----------------------------------------------------------------------------
if __name__ == "__main__":
    # Small shapes consistent with the module: [seq=8, batch=2, embed=32].
    S, B, D = 8, 2, 32
    max_len = 64

    key = jax.random.PRNGKey(0)
    x = jax.random.normal(key, (S, B, D), dtype=jnp.float32)
    pe = make_positional_encoding_table(D, max_len)
    ref = x + pe[:S]

    # Eval-mode forward (dropout = identity), matching module in .eval().
    out = positional_encoding_forward(x, pe, dropout_p=0.1, training=False)
    out = jax.block_until_ready(out)
    assert out.shape == (S, B, D)
    assert jnp.allclose(out, ref, atol=1e-6, rtol=1e-6)

    # Training-mode dropout: check semantics (each output element is either 0
    # or (x + pe) / (1 - p)); exact mask differs from torch's RNG stream.
    p = 0.1
    out_train = positional_encoding_forward(x, pe, dropout_p=p, training=True, seed=0)
    out_train = jax.block_until_ready(out_train)
    assert out_train.shape == (S, B, D)
    scaled = ref / (1.0 - p)
    is_zero = jnp.isclose(out_train, 0.0, atol=1e-6)
    is_scaled = jnp.isclose(out_train, scaled, atol=1e-5, rtol=1e-5)
    assert bool(jnp.all(jnp.logical_or(is_zero, is_scaled)))
    assert bool(jnp.any(is_scaled))

    # Also exercise the lane-dense 3-D path (D % 128 == 0, B % 8 == 0).
    S2, B2, D2 = 16, 8, 128
    x2 = jax.random.normal(jax.random.PRNGKey(1), (S2, B2, D2), dtype=jnp.float32)
    pe2 = make_positional_encoding_table(D2, 32)
    out2 = positional_encoding_forward(x2, pe2, dropout_p=0.1, training=False)
    out2 = jax.block_until_ready(out2)
    assert jnp.allclose(out2, x2 + pe2[:S2], atol=1e-6, rtol=1e-6)

    print("KERNEL_OK")
</pallas_src>

<mosaic_0001>
module attributes {stable_mosaic.version = 11 : i64} {
  func.func @_pe_add_kernel(%arg0: i32, %arg1: memref<8x64xf32, #tpu.memory_space<vmem>>, %arg2: memref<8x64xf32, #tpu.memory_space<vmem>>, %arg3: memref<8x64xf32, #tpu.memory_space<vmem>>) attributes {dimension_semantics = [#tpu.dimension_semantics<parallel>], iteration_bounds = array<i64: 1>, scalar_prefetch = 0 : i64, scratch_operands = 0 : i64, tpu.core_type = #tpu.core_type<tc>, window_params = [{transform_indices = @transform_0, window_bounds = array<i64: 8, 64>}, {transform_indices = @transform_1, window_bounds = array<i64: 8, 64>}, {transform_indices = @transform_2, window_bounds = array<i64: 8, 64>}]} {
    %c0 = arith.constant 0 : index
    %c0_0 = arith.constant 0 : index
    %0 = vector.load %arg1[%c0, %c0_0] : memref<8x64xf32, #tpu.memory_space<vmem>>, vector<8x64xf32>
    %c0_1 = arith.constant 0 : index
    %c0_2 = arith.constant 0 : index
    %1 = vector.load %arg2[%c0_1, %c0_2] : memref<8x64xf32, #tpu.memory_space<vmem>>, vector<8x64xf32>
    %2 = arith.addf %0, %1 : vector<8x64xf32>
    %c0_3 = arith.constant 0 : index
    %c0_4 = arith.constant 0 : index
    %3 = vector.load %arg3[%c0_3, %c0_4] : memref<8x64xf32, #tpu.memory_space<vmem>>, vector<8x64xf32>
    tpu.vector_store %arg3[%c0_3, %c0_4], %2 {strides = array<i32>} : memref<8x64xf32, #tpu.memory_space<vmem>>, vector<8x64xf32>,
    return
  }
  func.func @transform_0(%arg0: i32) -> (i32, i32) {
    %c0_i32 = arith.constant 0 : i32
    %c0_i32_0 = arith.constant 0 : i32
    return %arg0, %c0_i32 : i32, i32
  }
  func.func @transform_1(%arg0: i32) -> (i32, i32) {
    %c0_i32 = arith.constant 0 : i32
    %c0_i32_0 = arith.constant 0 : i32
    return %arg0, %c0_i32 : i32, i32
  }
  func.func @transform_2(%arg0: i32) -> (i32, i32) {
    %c0_i32 = arith.constant 0 : i32
    %c0_i32_0 = arith.constant 0 : i32
    return %arg0, %c0_i32 : i32, i32
  }
}

</mosaic_0001>

<llo_original>
// kernel: tpu_custom_call.1
$region0: #{tpu_custom_call.1}
  #allocation0 [shape = 'u32[]', space=smem, size = 0x4, offset = 0x4, fixed_abs, tag = 'smem constant byte address 0x4 - core index']
  #allocation1 [shape = 'u32[144,128]{1,0:T(1,128)}', space=vmem, size = 0x12000, scoped, tag = 'internal scratch']
  %s0 = inlined_call_operand.hbm [shape: f32[8,64], index: 0, kind: input, shape index: {}]
  %s1 = inlined_call_operand.hbm [shape: f32[8,64], index: 1, kind: input, shape index: {}]
  %s2 = inlined_call_operand.hbm [shape: f32[8,64], index: 2, kind: output, shape index: {}]
  %s3 = sld [smem:[#allocation0]]
  $region26: #{tpu_custom_call.1} parent=0
    _
  %s5 = ssub.s32 1, %s3
  %s6 = scalar_select 0, %s5, %s3
  $region1: #{tpu_custom_call.1} parent=0
    #allocation2 [shape = 'u8[4096]{0}', space=vmem, size = 0x1000, scoped, tag = 'input window, operand 0, single buffered']
    #allocation3 [shape = 's32[1]{0}', space=sflag, size = 0x4, scoped, tag = 'scoped memory for tpu_custom_call.1']
    #allocation4 [shape = 's32[1]{0}', space=sflag, size = 0x4, scoped, tag = 'scoped memory for tpu_custom_call.1']
    #allocation5 [shape = 'u8[4096]{0}', space=vmem, size = 0x1000, scoped, tag = 'input window, operand 1, single buffered']
    #allocation6 [shape = 's32[1]{0}', space=sflag, size = 0x4, scoped, tag = 'scoped memory for tpu_custom_call.1']
    #allocation7 [shape = 'u8[4096]{0}', space=vmem, size = 0x1000, scoped, tag = 'output window, operand 0, single buffered']
    %7 = vsyncpa [#allocation3], 0
    %8 = vsyncpa [#allocation6], 0
    %9 = vsyncpa [#allocation4], 0
    // Predicated region
    $region2: #{tpu_custom_call.1} parent=1 // pred_check
      _
    $region3: #{tpu_custom_call.1} parent=1 // pred_check_branch
      %11 = sbr.rel (0) target = $region5
    $region4: #{tpu_custom_call.1} parent=1 // pred_region
      %s13 = ssub.s32 128, 128
      %14 = vsyncadd [#allocation3], %s13
      %s16 = sshll.u32 [#allocation2], 4
      %s17 = int_to_ptr.vmem [resolvable:$true] %s16
      %19 = dma.hbm_to_vmem [thread:$0]  %s0, 128, %s17, [#allocation3]
    $region5: #{tpu_custom_call.1} parent=1 // pred_fallthru
      _
    // Predicated region
    $region6: #{tpu_custom_call.1} parent=1 // pred_check
      _
    $region7: #{tpu_custom_call.1} parent=1 // pred_check_branch
      %21 = sbr.rel (0) target = $region9
    $region8: #{tpu_custom_call.1} parent=1 // pred_region
      %s23 = ssub.s32 128, 128
      %24 = vsyncadd [#allocation6], %s23
      %s26 = sshll.u32 [#allocation5], 4
      %s27 = int_to_ptr.vmem [resolvable:$true] %s26
      %29 = dma.hbm_to_vmem [thread:$0]  %s1, 128, %s27, [#allocation6]
    $region9: #{tpu_custom_call.1} parent=1 // pred_fallthru
      _
    // Predicated region
    $region10: #{tpu_custom_call.1} parent=1 // pred_check
      _
    $region11: #{tpu_custom_call.1} parent=1 // pred_check_branch
      %31 = sbr.rel (0) target = $region13
    $region12: #{tpu_custom_call.1} parent=1 // pred_region
      %32 = dma.done [#allocation3], 128
    $region13: #{tpu_custom_call.1} parent=1 // pred_fallthru
      _
    // Predicated region
    $region14: #{tpu_custom_call.1} parent=1 // pred_check
      _
    $region15: #{tpu_custom_call.1} parent=1 // pred_check_branch
      %34 = sbr.rel (0) target = $region17
    $region16: #{tpu_custom_call.1} parent=1 // pred_region
      %35 = dma.done [#allocation6], 128
    $region17: #{tpu_custom_call.1} parent=1 // pred_fallthru
      _
    %v36 = vld [vmem:[#allocation2] sm:$0xff]
    %v37 = vld [vmem:[#allocation5] sm:$0xff]
    %v38 = vadd.f32 %v36, %v37
    %vm39 = vcmask 523264
    %40 = vst.msk [vmem:[#allocation7] sm:$0xff] %vm39, %v38
    // Predicated region
    $region18: #{tpu_custom_call.1} parent=1 // pred_check
      _
    $region19: #{tpu_custom_call.1} parent=1 // pred_check_branch
      %42 = sbr.rel (0) target = $region21
    $region20: #{tpu_custom_call.1} parent=1 // pred_region
      %s44 = ssub.s32 128, 128
      %45 = vsyncadd [#allocation4], %s44
      %s47 = sshll.u32 [#allocation7], 4
      %s48 = int_to_ptr.vmem [resolvable:$true] %s47
      %50 = dma.vmem_to_hbm [thread:$0]  %s48, 128, %s2, [#allocation4]
    $region21: #{tpu_custom_call.1} parent=1 // pred_fallthru
      _
    // Predicated region
    $region22: #{tpu_custom_call.1} parent=1 // pred_check
      _
    $region23: #{tpu_custom_call.1} parent=1 // pred_check_branch
      %52 = sbr.rel (0) target = $region25
    $region24: #{tpu_custom_call.1} parent=1 // pred_region
      %53 = dma.done [#allocation4], 128
    $region25: #{tpu_custom_call.1} parent=1 // pred_fallthru
      _
    %54 = vsyncpa [#allocation3], 1
    %55 = vsyncpa [#allocation6], 1
    %56 = vsyncpa [#allocation4], 1

</llo_original>
